<compile_context>
chip_gen: v7x
topology: tpu7x:2x2x1
jax: 0.10.0
libtpu: 0.0.40
codegen_flags: <defaults>
</compile_context>

<pallas_src>
import functools
import math

import jax
import jax.numpy as jnp
from jax.experimental import pallas as pl
from jax.experimental.pallas import tpu as pltpu


# --------------------------------------------------------------------------- #
# Kernels
# --------------------------------------------------------------------------- #
def _log_softmax_masked(logits, n_class):
    """Row-wise log_softmax ignoring padded class columns (>= n_class)."""
    col = jax.lax.broadcasted_iota(jnp.int32, logits.shape, 1)
    logits = jnp.where(col < n_class, logits, -1e30)
    m = jnp.max(logits, axis=1, keepdims=True)
    shifted = logits - m
    lse = jnp.log(jnp.sum(jnp.exp(shifted), axis=1, keepdims=True))
    return shifted - lse


def _linear_kernel(x_ref, w_ref, b_ref, h_ref):
    """h_block = x_block @ W + b  (fp32 accumulate, cast at store)."""
    h = jnp.dot(x_ref[...], w_ref[...], preferred_element_type=jnp.float32)
    h_ref[...] = (h + b_ref[...]).astype(h_ref.dtype)


def _gcn_mid_kernel(adj_ref, h_ref, w_ref, b_ref, out_ref):
    """out_block = relu(adj_block @ h) @ W_next + b_next (eval-mode dropout)."""
    z = jnp.maximum(
        jnp.dot(adj_ref[...], h_ref[...], preferred_element_type=jnp.float32),
        0.0)
    out = jnp.dot(z.astype(w_ref.dtype), w_ref[...],
                  preferred_element_type=jnp.float32) + b_ref[...]
    out_ref[...] = out.astype(out_ref.dtype)


def _gcn_head_kernel(adj_ref, h_ref, w_ref, b_ref, logp_ref, z_ref, *, n_class):
    """z1_block = relu(adj_block @ h2); logp_block = log_softmax(z1@W3+b3)."""
    z = jnp.maximum(
        jnp.dot(adj_ref[...], h_ref[...], preferred_element_type=jnp.float32),
        0.0)
    logits = jnp.dot(z.astype(w_ref.dtype), w_ref[...],
                     preferred_element_type=jnp.float32) + b_ref[...]
    logp_ref[...] = _log_softmax_masked(logits, n_class).astype(logp_ref.dtype)
    z_ref[...] = z.astype(z_ref.dtype)


def _gnn_fused_kernel(x_ref, adj_ref, w1_ref, b1_ref, w2_ref, b2_ref,
                      w3_ref, b3_ref, logp_ref, z1_ref, *, n_class):
    """Whole forward pass in one kernel (small-problem fast path)."""
    adj = adj_ref[...]
    mm = adj.dtype
    h1 = jnp.dot(x_ref[...], w1_ref[...],
                 preferred_element_type=jnp.float32) + b1_ref[...]
    z0 = jnp.maximum(
        jnp.dot(adj, h1.astype(mm), preferred_element_type=jnp.float32), 0.0)
    h2 = jnp.dot(z0.astype(mm), w2_ref[...],
                 preferred_element_type=jnp.float32) + b2_ref[...]
    z1 = jnp.maximum(
        jnp.dot(adj, h2.astype(mm), preferred_element_type=jnp.float32), 0.0)
    logits = jnp.dot(z1.astype(mm), w3_ref[...],
                     preferred_element_type=jnp.float32) + b3_ref[...]
    logp_ref[...] = _log_softmax_masked(logits, n_class).astype(logp_ref.dtype)
    z1_ref[...] = z1.astype(z1_ref.dtype)


# --------------------------------------------------------------------------- #
# Helpers
# --------------------------------------------------------------------------- #
def _round_up(v, m):
    return ((v + m - 1) // m) * m


def _pad2(a, rows, cols):
    r, c = a.shape
    return jnp.pad(a, ((0, rows - r), (0, cols - c)))


def _pick_block_m(n_pad):
    for bm in (512, 256, 128):
        if bm <= n_pad and n_pad % bm == 0:
            return bm
    return n_pad


def _vmem_limit(*blocks):
    """blocks: (shape, dtype) for every per-grid-step buffer. Double-buffered +
    headroom; never request more than 48 MiB (v7x has 64 MiB per TC)."""
    need = sum(math.prod(s) * jnp.dtype(d).itemsize for s, d in blocks)
    return int(min(max(4 * need, 8 << 20), 48 << 20))


def _fused_footprint_bytes(n_pad, f_pad, h1_pad, h2_pad, c_pad, mm):
    mm_b = jnp.dtype(mm).itemsize
    in_b = (n_pad * n_pad + n_pad * f_pad + f_pad * h1_pad
            + h1_pad * h2_pad + h2_pad * c_pad) * mm_b
    bias_b = 8 * (h1_pad + h2_pad + c_pad) * 4
    inter_b = n_pad * (2 * h1_pad + 2 * h2_pad + 2 * c_pad) * 4
    out_b = n_pad * (c_pad + h2_pad) * 4
    return in_b + bias_b + inter_b + out_b


# --------------------------------------------------------------------------- #
# Wrapper
# --------------------------------------------------------------------------- #
@functools.partial(jax.jit,
                   static_argnames=("matmul_dtype", "block_m", "force_blocked"))
def gnn_forward(x_in, adj, params, *, matmul_dtype=jnp.float32, block_m=None,
                force_blocked=False):
    """params: dict with w1,b1,w2,b2,w3,b3 (weights stored (in, out))."""
    n, f = x_in.shape
    h1 = params["w1"].shape[1]
    h2 = params["w2"].shape[1]
    c = params["w3"].shape[1]

    # Lane-dense padding: features / hidden / class dims -> multiples of 128,
    # node dim -> >= 128.  Padding is exact zeros, sliced off at the end.
    n_pad = max(_round_up(n, 128), 128)
    f_pad = _round_up(f, 128)
    h1_pad = _round_up(h1, 128)
    h2_pad = _round_up(h2, 128)
    c_pad = _round_up(c, 128)
    mm = matmul_dtype

    # Matmul operands in `mm` (bf16 halves adj traffic on v6e/v7x); biases fp32.
    x_p = _pad2(x_in, n_pad, f_pad).astype(mm)
    adj_p = _pad2(adj, n_pad, n_pad).astype(mm)
    w1_p = _pad2(params["w1"], f_pad, h1_pad).astype(mm)
    w2_p = _pad2(params["w2"], h1_pad, h2_pad).astype(mm)
    w3_p = _pad2(params["w3"], h2_pad, c_pad).astype(mm)
    b1_p = _pad2(params["b1"], 1, h1_pad).astype(jnp.float32)
    b2_p = _pad2(params["b2"], 1, h2_pad).astype(jnp.float32)
    b3_p = _pad2(params["b3"], 1, c_pad).astype(jnp.float32)

    cp = pltpu.CompilerParams

    # ------------------------- fused small-problem path ---------------------
    footprint = _fused_footprint_bytes(n_pad, f_pad, h1_pad, h2_pad, c_pad, mm)
    if not force_blocked and 2 * footprint <= (24 << 20):
        full = lambda shape: pl.BlockSpec(shape, lambda i: (0, 0))
        logp_pad, z1_pad = pl.pallas_call(
            functools.partial(_gnn_fused_kernel, n_class=c),
            grid=(1,),
            in_specs=[
                full((n_pad, f_pad)), full((n_pad, n_pad)),
                full((f_pad, h1_pad)), full((1, h1_pad)),
                full((h1_pad, h2_pad)), full((1, h2_pad)),
                full((h2_pad, c_pad)), full((1, c_pad)),
            ],
            out_specs=(full((n_pad, c_pad)), full((n_pad, h2_pad))),
            out_shape=(
                jax.ShapeDtypeStruct((n_pad, c_pad), jnp.float32),
                jax.ShapeDtypeStruct((n_pad, h2_pad), jnp.float32),
            ),
            compiler_params=cp(
                dimension_semantics=("arbitrary",),
                vmem_limit_bytes=int(min(max(3 * footprint, 16 << 20), 48 << 20))),
        )(x_p, adj_p, w1_p, b1_p, w2_p, b2_p, w3_p, b3_p)
        return logp_pad[:n, :c], z1_pad[:n, :h2]

    # ------------------------- row-blocked 3-stage path ---------------------
    bm = block_m if block_m is not None else _pick_block_m(n_pad)
    grid = (n_pad // bm,)

    # stage 1: h1 = x @ W1 + b1
    h1_full = pl.pallas_call(
        _linear_kernel,
        grid=grid,
        in_specs=[
            pl.BlockSpec((bm, f_pad), lambda i: (i, 0)),
            pl.BlockSpec((f_pad, h1_pad), lambda i: (0, 0)),
            pl.BlockSpec((1, h1_pad), lambda i: (0, 0)),
        ],
        out_specs=pl.BlockSpec((bm, h1_pad), lambda i: (i, 0)),
        out_shape=jax.ShapeDtypeStruct((n_pad, h1_pad), mm),
        compiler_params=cp(
            dimension_semantics=("parallel",),
            vmem_limit_bytes=_vmem_limit(
                ((bm, f_pad), mm), ((f_pad, h1_pad), mm),
                ((8, h1_pad), jnp.float32), ((bm, h1_pad), mm))),
    )(x_p, w1_p, b1_p)

    # stage 2: h2 = relu(adj @ h1) @ W2 + b2  (adj streamed in row blocks)
    h2_full = pl.pallas_call(
        _gcn_mid_kernel,
        grid=grid,
        in_specs=[
            pl.BlockSpec((bm, n_pad), lambda i: (i, 0)),      # adj row block
            pl.BlockSpec((n_pad, h1_pad), lambda i: (0, 0)),  # h1 resident
            pl.BlockSpec((h1_pad, h2_pad), lambda i: (0, 0)),
            pl.BlockSpec((1, h2_pad), lambda i: (0, 0)),
        ],
        out_specs=pl.BlockSpec((bm, h2_pad), lambda i: (i, 0)),
        out_shape=jax.ShapeDtypeStruct((n_pad, h2_pad), mm),
        compiler_params=cp(
            dimension_semantics=("parallel",),
            vmem_limit_bytes=_vmem_limit(
                ((bm, n_pad), mm), ((n_pad, h1_pad), mm),
                ((h1_pad, h2_pad), mm), ((8, h2_pad), jnp.float32),
                ((bm, h2_pad), mm))),
    )(adj_p, h1_full, w2_p, b2_p)

    # stage 3: z1 = relu(adj @ h2);  logp = log_softmax(z1 @ W3 + b3)
    logp_pad, z1_pad = pl.pallas_call(
        functools.partial(_gcn_head_kernel, n_class=c),
        grid=grid,
        in_specs=[
            pl.BlockSpec((bm, n_pad), lambda i: (i, 0)),      # adj row block
            pl.BlockSpec((n_pad, h2_pad), lambda i: (0, 0)),  # h2 resident
            pl.BlockSpec((h2_pad, c_pad), lambda i: (0, 0)),
            pl.BlockSpec((1, c_pad), lambda i: (0, 0)),
        ],
        out_specs=(
            pl.BlockSpec((bm, c_pad), lambda i: (i, 0)),
            pl.BlockSpec((bm, h2_pad), lambda i: (i, 0)),
        ),
        out_shape=(
            jax.ShapeDtypeStruct((n_pad, c_pad), jnp.float32),
            jax.ShapeDtypeStruct((n_pad, h2_pad), jnp.float32),
        ),
        compiler_params=cp(
            dimension_semantics=("parallel",),
            vmem_limit_bytes=_vmem_limit(
                ((bm, n_pad), mm), ((n_pad, h2_pad), mm),
                ((h2_pad, c_pad), mm), ((8, c_pad), jnp.float32),
                ((bm, c_pad), jnp.float32), ((bm, h2_pad), jnp.float32))),
    )(adj_p, h2_full, w3_p, b3_p)

    return logp_pad[:n, :c], z1_pad[:n, :h2]


# --------------------------------------------------------------------------- #
# Params / reference
# --------------------------------------------------------------------------- #
def init_params(key, n_feat, n_hidden_1, n_hidden_2, n_class):
    """nn.Linear-style init: U(-1/sqrt(fan_in), 1/sqrt(fan_in)); weights stored
    transposed as (in_features, out_features)."""
    ks = jax.random.split(key, 6)

    def linear(kw, kb, fan_in, fan_out):
        bound = 1.0 / jnp.sqrt(jnp.float32(fan_in))
        w = jax.random.uniform(kw, (fan_in, fan_out), jnp.float32, -bound, bound)
        b = jax.random.uniform(kb, (1, fan_out), jnp.float32, -bound, bound)
        return w, b

    w1, b1 = linear(ks[0], ks[1], n_feat, n_hidden_1)
    w2, b2 = linear(ks[2], ks[3], n_hidden_1, n_hidden_2)
    w3, b3 = linear(ks[4], ks[5], n_hidden_2, n_class)
    return dict(w1=w1, b1=b1, w2=w2, b2=b2, w3=w3, b3=b3)


def gnn_reference(x_in, adj, p):
    z0 = jnp.maximum(adj @ (x_in @ p["w1"] + p["b1"]), 0.0)
    z1 = jnp.maximum(adj @ (z0 @ p["w2"] + p["b2"]), 0.0)
    logits = z1 @ p["w3"] + p["b3"]
    logp = jax.nn.log_softmax(logits, axis=1)
    return logp, z1


# --------------------------------------------------------------------------- #
# Main
# --------------------------------------------------------------------------- #
if __name__ == "__main__":
    # Small GNN problem: 16 nodes, 32 input features, 32/32 hidden, 8 classes.
    n_nodes, n_feat, n_hidden_1, n_hidden_2, n_class = 16, 32, 32, 32, 8

    key = jax.random.PRNGKey(0)
    k_x, k_a, k_p = jax.random.split(key, 3)

    x_in = jax.random.normal(k_x, (n_nodes, n_feat), jnp.float32)

    # symmetric adjacency with self-loops, row-normalized (dense)
    a = (jax.random.uniform(k_a, (n_nodes, n_nodes)) < 0.3).astype(jnp.float32)
    a = jnp.maximum(a, a.T) + jnp.eye(n_nodes, dtype=jnp.float32)
    adj = a / jnp.sum(a, axis=1, keepdims=True)

    params = init_params(k_p, n_feat, n_hidden_1, n_hidden_2, n_class)
    logp_ref, z1_ref = gnn_reference(x_in, adj, params)

    # fused single-kernel fp32 path (default for small problems)
    logp, z1 = gnn_forward(x_in, adj, params)
    jax.block_until_ready((logp, z1))
    assert logp.shape == (n_nodes, n_class) and z1.shape == (n_nodes, n_hidden_2)
    assert jnp.allclose(logp, logp_ref, atol=1e-5, rtol=1e-5)
    assert jnp.allclose(z1, z1_ref, atol=1e-5, rtol=1e-5)

    # row-blocked 3-stage fp32 path (large-problem fallback) — exercised too
    logp_b, z1_b = gnn_forward(x_in, adj, params, force_blocked=True)
    jax.block_until_ready((logp_b, z1_b))
    assert jnp.allclose(logp_b, logp_ref, atol=1e-5, rtol=1e-5)
    assert jnp.allclose(z1_b, z1_ref, atol=1e-5, rtol=1e-5)

    # bf16-operand / fp32-accumulate path (v6e/v7x MXU-friendly) — loose check
    logp_bf, z1_bf = gnn_forward(x_in, adj, params, matmul_dtype=jnp.bfloat16)
    jax.block_until_ready((logp_bf, z1_bf))
    assert jnp.allclose(logp_bf, logp_ref, atol=1e-1, rtol=1e-1)
    assert jnp.allclose(z1_bf, z1_ref, atol=1e-1, rtol=1e-1)

    print("KERNEL_OK")
</pallas_src>

<mosaic_0001>
module attributes {stable_mosaic.version = 11 : i64} {
  func.func @_gnn_fused_kernel(%arg0: i32, %arg1: memref<128x128xf32, #tpu.memory_space<vmem>>, %arg2: memref<128x128xf32, #tpu.memory_space<vmem>>, %arg3: memref<128x128xf32, #tpu.memory_space<vmem>>, %arg4: memref<1x128xf32, #tpu.memory_space<vmem>>, %arg5: memref<128x128xf32, #tpu.memory_space<vmem>>, %arg6: memref<1x128xf32, #tpu.memory_space<vmem>>, %arg7: memref<128x128xf32, #tpu.memory_space<vmem>>, %arg8: memref<1x128xf32, #tpu.memory_space<vmem>>, %arg9: memref<128x128xf32, #tpu.memory_space<vmem>>, %arg10: memref<128x128xf32, #tpu.memory_space<vmem>>) attributes {dimension_semantics = [#tpu.dimension_semantics<arbitrary>], iteration_bounds = array<i64: 1>, scalar_prefetch = 0 : i64, scratch_operands = 0 : i64, tpu.core_type = #tpu.core_type<tc>, window_params = [{pipeline_mode = #tpu.pipeline_mode<synchronous>, transform_indices = @transform_0, window_bounds = array<i64: 128, 128>}, {pipeline_mode = #tpu.pipeline_mode<synchronous>, transform_indices = @transform_1, window_bounds = array<i64: 128, 128>}, {pipeline_mode = #tpu.pipeline_mode<synchronous>, transform_indices = @transform_2, window_bounds = array<i64: 128, 128>}, {pipeline_mode = #tpu.pipeline_mode<synchronous>, transform_indices = @transform_3, window_bounds = array<i64: 1, 128>}, {pipeline_mode = #tpu.pipeline_mode<synchronous>, transform_indices = @transform_4, window_bounds = array<i64: 128, 128>}, {pipeline_mode = #tpu.pipeline_mode<synchronous>, transform_indices = @transform_5, window_bounds = array<i64: 1, 128>}, {pipeline_mode = #tpu.pipeline_mode<synchronous>, transform_indices = @transform_6, window_bounds = array<i64: 128, 128>}, {pipeline_mode = #tpu.pipeline_mode<synchronous>, transform_indices = @transform_7, window_bounds = array<i64: 1, 128>}, {pipeline_mode = #tpu.pipeline_mode<synchronous>, transform_indices = @transform_8, window_bounds = array<i64: 128, 128>}, {pipeline_mode = #tpu.pipeline_mode<synchronous>, transform_indices = @transform_9, window_bounds = array<i64: 128, 128>}]} {
    %c0 = arith.constant 0 : index
    %c0_0 = arith.constant 0 : index
    %0 = vector.load %arg2[%c0, %c0_0] : memref<128x128xf32, #tpu.memory_space<vmem>>, vector<128x128xf32>
    %c0_1 = arith.constant 0 : index
    %c0_2 = arith.constant 0 : index
    %1 = vector.load %arg1[%c0_1, %c0_2] : memref<128x128xf32, #tpu.memory_space<vmem>>, vector<128x128xf32>
    %c0_3 = arith.constant 0 : index
    %c0_4 = arith.constant 0 : index
    %2 = vector.load %arg3[%c0_3, %c0_4] : memref<128x128xf32, #tpu.memory_space<vmem>>, vector<128x128xf32>
    %cst = arith.constant dense<0.000000e+00> : vector<128x128xf32>
    %3 = tpu.matmul %1, %2, %cst {dimension_numbers = #tpu.dot_dimension_numbers<[1], [0], [0], [1], [0, 0, 1, 1], [], []>} : vector<128x128xf32>, vector<128x128xf32>, vector<128x128xf32> -> vector<128x128xf32>
    %c0_5 = arith.constant 0 : index
    %c0_6 = arith.constant 0 : index
    %4 = vector.load %arg4[%c0_5, %c0_6] : memref<1x128xf32, #tpu.memory_space<vmem>>, vector<1x128xf32>
    %5 = vector.broadcast %4 : vector<1x128xf32> to vector<128x128xf32>
    %6 = arith.addf %3, %5 : vector<128x128xf32>
    %cst_7 = arith.constant dense<0.000000e+00> : vector<128x128xf32>
    %7 = tpu.matmul %0, %6, %cst_7 {dimension_numbers = #tpu.dot_dimension_numbers<[1], [0], [0], [1], [0, 0, 1, 1], [], []>} : vector<128x128xf32>, vector<128x128xf32>, vector<128x128xf32> -> vector<128x128xf32>
    %cst_8 = arith.constant 0.000000e+00 : f32
    %8 = vector.broadcast %cst_8 : f32 to vector<128x128xf32>
    %9 = arith.maximumf %7, %8 : vector<128x128xf32>
    %c0_9 = arith.constant 0 : index
    %c0_10 = arith.constant 0 : index
    %10 = vector.load %arg5[%c0_9, %c0_10] : memref<128x128xf32, #tpu.memory_space<vmem>>, vector<128x128xf32>
    %cst_11 = arith.constant dense<0.000000e+00> : vector<128x128xf32>
    %11 = tpu.matmul %9, %10, %cst_11 {dimension_numbers = #tpu.dot_dimension_numbers<[1], [0], [0], [1], [0, 0, 1, 1], [], []>} : vector<128x128xf32>, vector<128x128xf32>, vector<128x128xf32> -> vector<128x128xf32>
    %c0_12 = arith.constant 0 : index
    %c0_13 = arith.constant 0 : index
    %12 = vector.load %arg6[%c0_12, %c0_13] : memref<1x128xf32, #tpu.memory_space<vmem>>, vector<1x128xf32>
    %13 = vector.broadcast %12 : vector<1x128xf32> to vector<128x128xf32>
    %14 = arith.addf %11, %13 : vector<128x128xf32>
    %cst_14 = arith.constant dense<0.000000e+00> : vector<128x128xf32>
    %15 = tpu.matmul %0, %14, %cst_14 {dimension_numbers = #tpu.dot_dimension_numbers<[1], [0], [0], [1], [0, 0, 1, 1], [], []>} : vector<128x128xf32>, vector<128x128xf32>, vector<128x128xf32> -> vector<128x128xf32>
    %cst_15 = arith.constant 0.000000e+00 : f32
    %16 = vector.broadcast %cst_15 : f32 to vector<128x128xf32>
    %17 = arith.maximumf %15, %16 : vector<128x128xf32>
    %c0_16 = arith.constant 0 : index
    %c0_17 = arith.constant 0 : index
    %18 = vector.load %arg7[%c0_16, %c0_17] : memref<128x128xf32, #tpu.memory_space<vmem>>, vector<128x128xf32>
    %cst_18 = arith.constant dense<0.000000e+00> : vector<128x128xf32>
    %19 = tpu.matmul %17, %18, %cst_18 {dimension_numbers = #tpu.dot_dimension_numbers<[1], [0], [0], [1], [0, 0, 1, 1], [], []>} : vector<128x128xf32>, vector<128x128xf32>, vector<128x128xf32> -> vector<128x128xf32>
    %c0_19 = arith.constant 0 : index
    %c0_20 = arith.constant 0 : index
    %20 = vector.load %arg8[%c0_19, %c0_20] : memref<1x128xf32, #tpu.memory_space<vmem>>, vector<1x128xf32>
    %21 = vector.broadcast %20 : vector<1x128xf32> to vector<128x128xf32>
    %22 = arith.addf %19, %21 : vector<128x128xf32>
    %23 = tpu.iota {dimensions = array<i32: 1>} : vector<128x128xi32>
    %c8_i32 = arith.constant 8 : i32
    %24 = vector.broadcast %c8_i32 : i32 to vector<128x128xi32>
    %25 = arith.cmpi slt, %23, %24 : vector<128x128xi32>
    %cst_21 = arith.constant -1.000000e+30 : f32
    %26 = vector.broadcast %cst_21 : f32 to vector<128x128xf32>
    %27 = arith.select %25, %22, %26 : vector<128x128xi1>, vector<128x128xf32>
    %cst_22 = arith.constant dense<0xFF800000> : vector<128xf32>
    %28 = vector.multi_reduction <maximumf>, %27, %cst_22 [1] : vector<128x128xf32> to vector<128xf32>
    %29 = vector.shape_cast %28 : vector<128xf32> to vector<128x1xf32>
    %30 = vector.broadcast %29 : vector<128x1xf32> to vector<128x128xf32>
    %31 = arith.subf %27, %30 : vector<128x128xf32>
    %32 = math.exp %31 : vector<128x128xf32>
    %cst_23 = arith.constant dense<0.000000e+00> : vector<128xf32>
    %33 = vector.multi_reduction <add>, %32, %cst_23 [1] : vector<128x128xf32> to vector<128xf32>
    %34 = vector.shape_cast %33 : vector<128xf32> to vector<128x1xf32>
    %35 = math.log %34 : vector<128x1xf32>
    %36 = vector.broadcast %35 : vector<128x1xf32> to vector<128x128xf32>
    %37 = arith.subf %31, %36 : vector<128x128xf32>
    %c0_24 = arith.constant 0 : index
    %c0_25 = arith.constant 0 : index
    %38 = vector.load %arg9[%c0_24, %c0_25] : memref<128x128xf32, #tpu.memory_space<vmem>>, vector<128x128xf32>
    tpu.vector_store %arg9[%c0_24, %c0_25], %37 {strides = array<i32>} : memref<128x128xf32, #tpu.memory_space<vmem>>, vector<128x128xf32>,
    %c0_26 = arith.constant 0 : index
    %c0_27 = arith.constant 0 : index
    %39 = vector.load %arg10[%c0_26, %c0_27] : memref<128x128xf32, #tpu.memory_space<vmem>>, vector<128x128xf32>
    tpu.vector_store %arg10[%c0_26, %c0_27], %17 {strides = array<i32>} : memref<128x128xf32, #tpu.memory_space<vmem>>, vector<128x128xf32>,
    return
  }
  func.func @transform_0(%arg0: i32) -> (i32, i32) {
    %c0_i32 = arith.constant 0 : i32
    %c0_i32_0 = arith.constant 0 : i32
    %c0_i32_1 = arith.constant 0 : i32
    return %c0_i32, %c0_i32_0 : i32, i32
  }
  func.func @transform_1(%arg0: i32) -> (i32, i32) {
    %c0_i32 = arith.constant 0 : i32
    %c0_i32_0 = arith.constant 0 : i32
    %c0_i32_1 = arith.constant 0 : i32
    return %c0_i32, %c0_i32_0 : i32, i32
  }
  func.func @transform_2(%arg0: i32) -> (i32, i32) {
    %c0_i32 = arith.constant 0 : i32
    %c0_i32_0 = arith.constant 0 : i32
    %c0_i32_1 = arith.constant 0 : i32
    return %c0_i32, %c0_i32_0 : i32, i32
  }
  func.func @transform_3(%arg0: i32) -> (i32, i32) {
    %c0_i32 = arith.constant 0 : i32
    %c0_i32_0 = arith.constant 0 : i32
    %c0_i32_1 = arith.constant 0 : i32
    return %c0_i32, %c0_i32_0 : i32, i32
  }
  func.func @transform_4(%arg0: i32) -> (i32, i32) {
    %c0_i32 = arith.constant 0 : i32
    %c0_i32_0 = arith.constant 0 : i32
    %c0_i32_1 = arith.constant 0 : i32
    return %c0_i32, %c0_i32_0 : i32, i32
  }
  func.func @transform_5(%arg0: i32) -> (i32, i32) {
    %c0_i32 = arith.constant 0 : i32
    %c0_i32_0 = arith.constant 0 : i32
    %c0_i32_1 = arith.constant 0 : i32
    return %c0_i32, %c0_i32_0 : i32, i32
  }
  func.func @transform_6(%arg0: i32) -> (i32, i32) {
    %c0_i32 = arith.constant 0 : i32
    %c0_i32_0 = arith.constant 0 : i32
    %c0_i32_1 = arith.constant 0 : i32
    return %c0_i32, %c0_i32_0 : i32, i32
  }
  func.func @transform_7(%arg0: i32) -> (i32, i32) {
    %c0_i32 = arith.constant 0 : i32
    %c0_i32_0 = arith.constant 0 : i32
    %c0_i32_1 = arith.constant 0 : i32
    return %c0_i32, %c0_i32_0 : i32, i32
  }
  func.func @transform_8(%arg0: i32) -> (i32, i32) {
    %c0_i32 = arith.constant 0 : i32
    %c0_i32_0 = arith.constant 0 : i32
    %c0_i32_1 = arith.constant 0 : i32
    return %c0_i32, %c0_i32_0 : i32, i32
  }
  func.func @transform_9(%arg0: i32) -> (i32, i32) {
    %c0_i32 = arith.constant 0 : i32
    %c0_i32_0 = arith.constant 0 : i32
    %c0_i32_1 = arith.constant 0 : i32
    return %c0_i32, %c0_i32_0 : i32, i32
  }
}

</mosaic_0001>

<llo_original>
// kernel: gnn_forward.1
$region0: #{gnn_forward.1}
  #allocation0 [shape = 'u32[]', space=smem, size = 0x4, offset = 0x4, fixed_abs, tag = 'smem constant byte address 0x4 - core index']
  #allocation1 [shape = 'u32[144,128]{1,0:T(1,128)}', space=vmem, size = 0x12000, scoped, tag = 'internal scratch']
  %s0 = inlined_call_operand.vmem [shape: f32[128,128], index: 0, kind: input, shape index: {}]
  %s1 = inlined_call_operand.vmem [shape: f32[128,128], index: 1, kind: input, shape index: {}]
  %s2 = inlined_call_operand.vmem [shape: f32[128,128], index: 2, kind: input, shape index: {}]
  %s3 = inlined_call_operand.vmem [shape: f32[1,128], index: 3, kind: input, shape index: {}]
  %s4 = inlined_call_operand.vmem [shape: f32[128,128], index: 4, kind: input, shape index: {}]
  %s5 = inlined_call_operand.vmem [shape: f32[1,128], index: 5, kind: input, shape index: {}]
  %s6 = inlined_call_operand.vmem [shape: f32[128,128], index: 6, kind: input, shape index: {}]
  %s7 = inlined_call_operand.vmem [shape: f32[1,128], index: 7, kind: input, shape index: {}]
  %s8 = inlined_call_operand.vmem [shape: f32[128,128], index: 8, kind: output, shape index: {0}]
  %s9 = inlined_call_operand.vmem [shape: f32[128,128], index: 9, kind: output, shape index: {1}]
  %10 = xla_tuple %s8, %s9
  %s11 = sld [smem:[#allocation0]]
  $region50: #{gnn_forward.1} parent=0
    _
  %s13 = ssub.s32 1, %s11
  %s14 = scalar_select 0, %s13, %s11
  // Predicated region
  $region2: #{gnn_forward.1} parent=0 // pred_check
    _
  $region3: #{gnn_forward.1} parent=0 // pred_check_branch
    %16 = sbr.rel (0) target = $region5
  $region4: #{gnn_forward.1} parent=0 // pred_region
    _
  $region5: #{gnn_forward.1} parent=0 // pred_fallthru
    _
  // Predicated region
  $region6: #{gnn_forward.1} parent=0 // pred_check
    _
  $region7: #{gnn_forward.1} parent=0 // pred_check_branch
    %18 = sbr.rel (0) target = $region9
  $region8: #{gnn_forward.1} parent=0 // pred_region
    _
  $region9: #{gnn_forward.1} parent=0 // pred_fallthru
    _
  // Predicated region
  $region10: #{gnn_forward.1} parent=0 // pred_check
    _
  $region11: #{gnn_forward.1} parent=0 // pred_check_branch
    %20 = sbr.rel (0) target = $region13
  $region12: #{gnn_forward.1} parent=0 // pred_region
    _
  $region13: #{gnn_forward.1} parent=0 // pred_fallthru
    _
  // Predicated region
  $region14: #{gnn_forward.1} parent=0 // pred_check
    _
  $region15: #{gnn_forward.1} parent=0 // pred_check_branch
    %22 = sbr.rel (0) target = $region17
  $region16: #{gnn_forward.1} parent=0 // pred_region
    _
  $region17: #{gnn_forward.1} parent=0 // pred_fallthru
    _
  // Predicated region
  $region18: #{gnn_forward.1} parent=0 // pred_check
    _
  $region19: #{gnn_forward.1} parent=0 // pred_check_branch
    %24 = sbr.rel (0) target = $region21
  $region20: #{gnn_forward.1} parent=0 // pred_region
    _
  $region21: #{gnn_forward.1} parent=0 // pred_fallthru
    _
  // Predicated region
  $region22: #{gnn_forward.1} parent=0 // pred_check
    _
  $region23: #{gnn_forward.1} parent=0 // pred_check_branch
    %26 = sbr.rel (0) target = $region25
  $region24: #{gnn_forward.1} parent=0 // pred_region
    _
  $region25: #{gnn_forward.1} parent=0 // pred_fallthru
    _
  // Predicated region
  $region26: #{gnn_forward.1} parent=0 // pred_check
    _
  $region27: #{gnn_forward.1} parent=0 // pred_check_branch
    %28 = sbr.rel (0) target = $region29
  $region28: #{gnn_forward.1} parent=0 // pred_region
    _
  $region29: #{gnn_forward.1} parent=0 // pred_fallthru
    _
  // Predicated region
  $region30: #{gnn_forward.1} parent=0 // pred_check
    _
  $region31: #{gnn_forward.1} parent=0 // pred_check_branch
    %30 = sbr.rel (0) target = $region33
  $region32: #{gnn_forward.1} parent=0 // pred_region
    _
  $region33: #{gnn_forward.1} parent=0 // pred_fallthru
    _
  %v31 = vld [vmem:[%s1] sm:$0xff]
  %v32 = vld [vmem:[%s1 + $0x8] sm:$0xff]
  %v33 = vld [vmem:[%s1 + $0x10] sm:$0xff]
  %v34 = vld [vmem:[%s1 + $0x18] sm:$0xff]
  %v35 = vld [vmem:[%s1 + $0x20] sm:$0xff]
  %v36 = vld [vmem:[%s1 + $0x28] sm:$0xff]
  %v37 = vld [vmem:[%s1 + $0x30] sm:$0xff]
  %v38 = vld [vmem:[%s1 + $0x38] sm:$0xff]
  %v39 = vld [vmem:[%s1 + $0x40] sm:$0xff]
  %v40 = vld [vmem:[%s1 + $0x48] sm:$0xff]
  %v41 = vld [vmem:[%s1 + $0x50] sm:$0xff]
  %v42 = vld [vmem:[%s1 + $0x58] sm:$0xff]
  %v43 = vld [vmem:[%s1 + $0x60] sm:$0xff]
  %v44 = vld [vmem:[%s1 + $0x68] sm:$0xff]
  %v45 = vld [vmem:[%s1 + $0x70] sm:$0xff]
  %v46 = vld [vmem:[%s1 + $0x78] sm:$0xff]
  %v47 = vld [vmem:[%s0] sm:$0xff]
  %v48 = vld [vmem:[%s0 + $0x8] sm:$0xff]
  %v49 = vld [vmem:[%s0 + $0x10] sm:$0xff]
  %v50 = vld [vmem:[%s0 + $0x18] sm:$0xff]
  %v51 = vld [vmem:[%s0 + $0x20] sm:$0xff]
  %v52 = vld [vmem:[%s0 + $0x28] sm:$0xff]
  %v53 = vld [vmem:[%s0 + $0x30] sm:$0xff]
  %v54 = vld [vmem:[%s0 + $0x38] sm:$0xff]
  %v55 = vld [vmem:[%s0 + $0x40] sm:$0xff]
  %v56 = vld [vmem:[%s0 + $0x48] sm:$0xff]
  %v57 = vld [vmem:[%s0 + $0x50] sm:$0xff]
  %v58 = vld [vmem:[%s0 + $0x58] sm:$0xff]
  %v59 = vld [vmem:[%s0 + $0x60] sm:$0xff]
  %v60 = vld [vmem:[%s0 + $0x68] sm:$0xff]
  %v61 = vld [vmem:[%s0 + $0x70] sm:$0xff]
  %v62 = vld [vmem:[%s0 + $0x78] sm:$0xff]
  %v63 = vld [vmem:[%s2] sm:$0xff]
  %v64 = vld [vmem:[%s2 + $0x8] sm:$0xff]
  %v65 = vld [vmem:[%s2 + $0x10] sm:$0xff]
  %v66 = vld [vmem:[%s2 + $0x18] sm:$0xff]
  %v67 = vld [vmem:[%s2 + $0x20] sm:$0xff]
  %v68 = vld [vmem:[%s2 + $0x28] sm:$0xff]
  %v69 = vld [vmem:[%s2 + $0x30] sm:$0xff]
  %v70 = vld [vmem:[%s2 + $0x38] sm:$0xff]
  %v71 = vld [vmem:[%s2 + $0x40] sm:$0xff]
  %v72 = vld [vmem:[%s2 + $0x48] sm:$0xff]
  %v73 = vld [vmem:[%s2 + $0x50] sm:$0xff]
  %v74 = vld [vmem:[%s2 + $0x58] sm:$0xff]
  %v75 = vld [vmem:[%s2 + $0x60] sm:$0xff]
  %v76 = vld [vmem:[%s2 + $0x68] sm:$0xff]
  %v77 = vld [vmem:[%s2 + $0x70] sm:$0xff]
  %v78 = vld [vmem:[%s2 + $0x78] sm:$0xff]
  %v79 = vld [vmem:[%s3] sm:$0x1]
  %v81 = vlaneseq
  %v82 = vshrl.u32 %v81, 7
  %v83 = vsub.s32 0, %v82
  %v84 = vrot.slane %v79, %v83
  %86 = vmatprep.subr.mxu0 0.0
  %87 = vmatpush1.msra.mxu0 %v63
  %88 = vmatprep.subr.mxu0 0.0
  %89 = vmatpush1.msra.mxu0 %v64
  %90 = vmatprep.subr.mxu0 0.0
  %91 = vmatpush1.msra.mxu0 %v65
  %92 = vmatprep.subr.mxu0 0.0
  %93 = vmatpush1.msra.mxu0 %v66
  %94 = vmatprep.subr.mxu0 0.0
  %95 = vmatpush1.msra.mxu0 %v67
  %96 = vmatprep.subr.mxu0 0.0
  %97 = vmatpush1.msra.mxu0 %v68
  %98 = vmatprep.subr.mxu0 0.0
  %99 = vmatpush1.msra.mxu0 %v69
  %100 = vmatprep.subr.mxu0 0.0
  %101 = vmatpush1.msra.mxu0 %v70
  %102 = vmatprep.subr.mxu0 0.0
  %103 = vmatpush1.msra.mxu0 %v71
  %104 = vmatprep.subr.mxu0 0.0
  %105 = vmatpush1.msra.mxu0 %v72
  %106 = vmatprep.subr.mxu0 0.0
  %107 = vmatpush1.msra.mxu0 %v73
  %108 = vmatprep.subr.mxu0 0.0
  %109 = vmatpush1.msra.mxu0 %v74
  %110 = vmatprep.subr.mxu0 0.0
  %111 = vmatpush1.msra.mxu0 %v75
  %112 = vmatprep.subr.mxu0 0.0
  %113 = vmatpush1.msra.mxu0 %v76
  %114 = vmatprep.subr.mxu0 0.0
  %115 = vmatpush1.msra.mxu0 %v77
  %116 = vmatprep.subr.mxu0 0.0
  %117 = vmatpush1.msra.mxu0 %v78
  %118 = vmatprep.subr.mxu0 0.0
  %119 = vmatpush1.msra.mxu0 0.0
  %120 = vmatprep.subr.mxu0 0.0
  %121 = vmatpush1.msra.mxu0 0.0
  %122 = vmatprep.subr.mxu0 0.0
  %123 = vmatpush1.msra.mxu0 0.0
  %124 = vmatprep.subr.mxu0 0.0
  %125 = vmatpush1.msra.mxu0 0.0
  %126 = vmatprep.subr.mxu0 0.0
  %127 = vmatpush1.msra.mxu0 0.0
  %128 = vmatprep.subr.mxu0 0.0
  %129 = vmatpush1.msra.mxu0 0.0
  %130 = vmatprep.subr.mxu0 0.0
  %131 = vmatpush1.msra.mxu0 0.0
  %132 = vmatprep.subr.mxu0 0.0
  %133 = vmatpush1.msra.mxu0 0.0
  %134 = vmatprep.subr.mxu0 0.0
  %135 = vmatpush1.msra.mxu0 0.0
  %136 = vmatprep.subr.mxu0 0.0
  %137 = vmatpush1.msra.mxu0 0.0
  %138 = vmatprep.subr.mxu0 0.0
  %139 = vmatpush1.msra.mxu0 0.0
  %140 = vmatprep.subr.mxu0 0.0
  %141 = vmatpush1.msra.mxu0 0.0
  %142 = vmatprep.subr.mxu0 0.0
  %143 = vmatpush1.msra.mxu0 0.0
  %144 = vmatprep.subr.mxu0 0.0
  %145 = vmatpush1.msra.mxu0 0.0
  %146 = vmatprep.subr.mxu0 0.0
  %147 = vmatpush1.msra.mxu0 0.0
  %148 = vmatprep.subr.mxu0 0.0
  %149 = vmatpush1.msra.mxu0 0.0
  %150 = vmatprep.mubr.f32.mxu0 0.0
  %151 = vmatmul.mubr.f32.gmra.mrb[0].mxu0 %v47
  %v152 = vpop.f32.mrb[0].mxu0
  %v153 = vadd.f32 %v84, %v152
  %v154 = vpop.f32.mrb[0].mxu0
  %155 = vmatprep.mubr.f32.mxu0 0.0
  %156 = vmatmul.mubr.f32.gmra.mrb[0].mxu0 %v48
  %v157 = vpop.f32.mrb[0].mxu0
  %v158 = vadd.f32 %v84, %v157
  %v159 = vpop.f32.mrb[0].mxu0
  %160 = vmatprep.mubr.f32.mxu0 0.0
  %161 = vmatmul.mubr.f32.gmra.mrb[0].mxu0 %v49
  %v162 = vpop.f32.mrb[0].mxu0
  %v163 = vadd.f32 %v84, %v162
  %v164 = vpop.f32.mrb[0].mxu0
  %165 = vmatprep.mubr.f32.mxu0 0.0
  %166 = vmatmul.mubr.f32.gmra.mrb[0].mxu0 %v50
  %v167 = vpop.f32.mrb[0].mxu0
  %v168 = vadd.f32 %v84, %v167
  %v169 = vpop.f32.mrb[0].mxu0
  %170 = vmatprep.mubr.f32.mxu0 0.0
  %171 = vmatmul.mubr.f32.gmra.mrb[0].mxu0 %v51
  %v172 = vpop.f32.mrb[0].mxu0
  %v173 = vadd.f32 %v84, %v172
  %v174 = vpop.f32.mrb[0].mxu0
  %175 = vmatprep.mubr.f32.mxu0 0.0
  %176 = vmatmul.mubr.f32.gmra.mrb[0].mxu0 %v52
  %v177 = vpop.f32.mrb[0].mxu0
  %v178 = vadd.f32 %v84, %v177
  %v179 = vpop.f32.mrb[0].mxu0
  %180 = vmatprep.mubr.f32.mxu0 0.0
  %181 = vmatmul.mubr.f32.gmra.mrb[0].mxu0 %v53
  %v182 = vpop.f32.mrb[0].mxu0
  %v183 = vadd.f32 %v84, %v182
  %v184 = vpop.f32.mrb[0].mxu0
  %185 = vmatprep.mubr.f32.mxu0 0.0
  %186 = vmatmul.mubr.f32.gmra.mrb[0].mxu0 %v54
  %v187 = vpop.f32.mrb[0].mxu0
  %v188 = vadd.f32 %v84, %v187
  %v189 = vpop.f32.mrb[0].mxu0
  %190 = vmatprep.mubr.f32.mxu0 0.0
  %191 = vmatmul.mubr.f32.gmra.mrb[0].mxu0 %v55
  %v192 = vpop.f32.mrb[0].mxu0
  %v193 = vadd.f32 %v84, %v192
  %v194 = vpop.f32.mrb[0].mxu0
  %195 = vmatprep.mubr.f32.mxu0 0.0
  %196 = vmatmul.mubr.f32.gmra.mrb[0].mxu0 %v56
  %v197 = vpop.f32.mrb[0].mxu0
  %v198 = vadd.f32 %v84, %v197
  %v199 = vpop.f32.mrb[0].mxu0
  %200 = vmatprep.mubr.f32.mxu0 0.0
  %201 = vmatmul.mubr.f32.gmra.mrb[0].mxu0 %v57
  %v202 = vpop.f32.mrb[0].mxu0
  %v203 = vadd.f32 %v84, %v202
  %v204 = vpop.f32.mrb[0].mxu0
  %205 = vmatprep.mubr.f32.mxu0 0.0
  %206 = vmatmul.mubr.f32.gmra.mrb[0].mxu0 %v58
  %v207 = vpop.f32.mrb[0].mxu0
  %v208 = vadd.f32 %v84, %v207
  %v209 = vpop.f32.mrb[0].mxu0
  %210 = vmatprep.mubr.f32.mxu0 0.0
  %211 = vmatmul.mubr.f32.gmra.mrb[0].mxu0 %v59
  %v212 = vpop.f32.mrb[0].mxu0
  %v213 = vadd.f32 %v84, %v212
  %v214 = vpop.f32.mrb[0].mxu0
  %215 = vmatprep.mubr.f32.mxu0 0.0
  %216 = vmatmul.mubr.f32.gmra.mrb[0].mxu0 %v60
  %v217 = vpop.f32.mrb[0].mxu0
  %v218 = vadd.f32 %v84, %v217
  %v219 = vpop.f32.mrb[0].mxu0
  %220 = vmatprep.mubr.f32.mxu0 0.0
  %221 = vmatmul.mubr.f32.gmra.mrb[0].mxu0 %v61
  %v222 = vpop.f32.mrb[0].mxu0
  %v223 = vadd.f32 %v84, %v222
  %v224 = vpop.f32.mrb[0].mxu0
  %225 = vmatprep.mubr.f32.mxu0 0.0
  %226 = vmatmul.mubr.f32.gmra.mrb[0].mxu0 %v62
  %v227 = vpop.f32.mrb[0].mxu0
  %v228 = vadd.f32 %v84, %v227
  %v229 = vpop.f32.mrb[0].mxu0
  %230 = vdwg.mxu0
  %231 = vmatprep.subr.mxu0 0.0
  %232 = vmatpush1.msra.mxu0 %v153
  %233 = vmatprep.subr.mxu0 0.0
  %234 = vmatpush1.msra.mxu0 %v158
  %235 = vmatprep.subr.mxu0 0.0
  %236 = vmatpush1.msra.mxu0 %v163
  %237 = vmatprep.subr.mxu0 0.0
  %238 = vmatpush1.msra.mxu0 %v168
  %239 = vmatprep.subr.mxu0 0.0
  %240 = vmatpush1.msra.mxu0 %v173
  %241 = vmatprep.subr.mxu0 0.0
  %242 = vmatpush1.msra.mxu0 %v178
  %243 = vmatprep.subr.mxu0 0.0
  %244 = vmatpush1.msra.mxu0 %v183
  %245 = vmatprep.subr.mxu0 0.0
  %246 = vmatpush1.msra.mxu0 %v188
  %247 = vmatprep.subr.mxu0 0.0
  %248 = vmatpush1.msra.mxu0 %v193
  %249 = vmatprep.subr.mxu0 0.0
  %250 = vmatpush1.msra.mxu0 %v198
  %251 = vmatprep.subr.mxu0 0.0
  %252 = vmatpush1.msra.mxu0 %v203
  %253 = vmatprep.subr.mxu0 0.0
  %254 = vmatpush1.msra.mxu0 %v208
  %255 = vmatprep.subr.mxu0 0.0
  %256 = vmatpush1.msra.mxu0 %v213
  %257 = vmatprep.subr.mxu0 0.0
  %258 = vmatpush1.msra.mxu0 %v218
  %259 = vmatprep.subr.mxu0 0.0
  %260 = vmatpush1.msra.mxu0 %v223
  %261 = vmatprep.subr.mxu0 0.0
  %262 = vmatpush1.msra.mxu0 %v228
  %263 = vmatprep.subr.mxu0 0.0
  %264 = vmatpush1.msra.mxu0 0.0
  %265 = vmatprep.subr.mxu0 0.0
  %266 = vmatpush1.msra.mxu0 0.0
  %267 = vmatprep.subr.mxu0 0.0
  %268 = vmatpush1.msra.mxu0 0.0
  %269 = vmatprep.subr.mxu0 0.0
  %270 = vmatpush1.msra.mxu0 0.0
  %271 = vmatprep.subr.mxu0 0.0
  %272 = vmatpush1.msra.mxu0 0.0
  %273 = vmatprep.subr.mxu0 0.0
  %274 = vmatpush1.msra.mxu0 0.0
  %275 = vmatprep.subr.mxu0 0.0
  %276 = vmatpush1.msra.mxu0 0.0
  %277 = vmatprep.subr.mxu0 0.0
  %278 = vmatpush1.msra.mxu0 0.0
  %279 = vmatprep.subr.mxu0 0.0
  %280 = vmatpush1.msra.mxu0 0.0
  %281 = vmatprep.subr.mxu0 0.0
  %282 = vmatpush1.msra.mxu0 0.0
  %283 = vmatprep.subr.mxu0 0.0
  %284 = vmatpush1.msra.mxu0 0.0
  %285 = vmatprep.subr.mxu0 0.0
  %286 = vmatpush1.msra.mxu0 0.0
  %287 = vmatprep.subr.mxu0 0.0
  %288 = vmatpush1.msra.mxu0 0.0
  %289 = vmatprep.subr.mxu0 0.0
  %290 = vmatpush1.msra.mxu0 0.0
  %291 = vmatprep.subr.mxu0 0.0
  %292 = vmatpush1.msra.mxu0 0.0
  %293 = vmatprep.subr.mxu0 0.0
  %294 = vmatpush1.msra.mxu0 0.0
  %295 = vmatprep.mubr.f32.mxu0 0.0
  %296 = vmatmul.mubr.f32.gmra.mrb[0].mxu0 %v31
  %v297 = vpop.f32.mrb[0].mxu0
  %v298 = vadd.f32 0.0, %v297
  %v299 = vpop.f32.mrb[0].mxu0
  %300 = vmatprep.mubr.f32.mxu0 0.0
  %301 = vmatmul.mubr.f32.gmra.mrb[0].mxu0 %v32
  %v302 = vpop.f32.mrb[0].mxu0
  %v303 = vadd.f32 0.0, %v302
  %v304 = vpop.f32.mrb[0].mxu0
  %305 = vmatprep.mubr.f32.mxu0 0.0
  %306 = vmatmul.mubr.f32.gmra.mrb[0].mxu0 %v33
  %v307 = vpop.f32.mrb[0].mxu0
  %v308 = vadd.f32 0.0, %v307
  %v309 = vpop.f32.mrb[0].mxu0
  %310 = vmatprep.mubr.f32.mxu0 0.0
  %311 = vmatmul.mubr.f32.gmra.mrb[0].mxu0 %v34
  %v312 = vpop.f32.mrb[0].mxu0
  %v313 = vadd.f32 0.0, %v312
  %v314 = vpop.f32.mrb[0].mxu0
  %315 = vmatprep.mubr.f32.mxu0 0.0
  %316 = vmatmul.mubr.f32.gmra.mrb[0].mxu0 %v35
  %v317 = vpop.f32.mrb[0].mxu0
  %v318 = vadd.f32 0.0, %v317
  %v319 = vpop.f32.mrb[0].mxu0
  %320 = vmatprep.mubr.f32.mxu0 0.0
  %321 = vmatmul.mubr.f32.gmra.mrb[0].mxu0 %v36
  %v322 = vpop.f32.mrb[0].mxu0
  %v323 = vadd.f32 0.0, %v322
  %v324 = vpop.f32.mrb[0].mxu0
  %325 = vmatprep.mubr.f32.mxu0 0.0
  %326 = vmatmul.mubr.f32.gmra.mrb[0].mxu0 %v37
  %v327 = vpop.f32.mrb[0].mxu0
  %v328 = vadd.f32 0.0, %v327
  %v329 = vpop.f32.mrb[0].mxu0
  %330 = vmatprep.mubr.f32.mxu0 0.0
  %331 = vmatmul.mubr.f32.gmra.mrb[0].mxu0 %v38
  %v332 = vpop.f32.mrb[0].mxu0
  %v333 = vadd.f32 0.0, %v332
  %v334 = vpop.f32.mrb[0].mxu0
  %335 = vmatprep.mubr.f32.mxu0 0.0
  %336 = vmatmul.mubr.f32.gmra.mrb[0].mxu0 %v39
  %v337 = vpop.f32.mrb[0].mxu0
  %v338 = vadd.f32 0.0, %v337
  %v339 = vpop.f32.mrb[0].mxu0
  %340 = vmatprep.mubr.f32.mxu0 0.0
  %341 = vmatmul.mubr.f32.gmra.mrb[0].mxu0 %v40
  %v342 = vpop.f32.mrb[0].mxu0
  %v343 = vadd.f32 0.0, %v342
  %v344 = vpop.f32.mrb[0].mxu0
  %345 = vmatprep.mubr.f32.mxu0 0.0
  %346 = vmatmul.mubr.f32.gmra.mrb[0].mxu0 %v41
  %v347 = vpop.f32.mrb[0].mxu0
  %v348 = vadd.f32 0.0, %v347
  %v349 = vpop.f32.mrb[0].mxu0
  %350 = vmatprep.mubr.f32.mxu0 0.0
  %351 = vmatmul.mubr.f32.gmra.mrb[0].mxu0 %v42
  %v352 = vpop.f32.mrb[0].mxu0
  %v353 = vadd.f32 0.0, %v352
  %v354 = vpop.f32.mrb[0].mxu0
  %355 = vmatprep.mubr.f32.mxu0 0.0
  %356 = vmatmul.mubr.f32.gmra.mrb[0].mxu0 %v43
  %v357 = vpop.f32.mrb[0].mxu0
  %v358 = vadd.f32 0.0, %v357
  %v359 = vpop.f32.mrb[0].mxu0
  %360 = vmatprep.mubr.f32.mxu0 0.0
  %361 = vmatmul.mubr.f32.gmra.mrb[0].mxu0 %v44
  %v362 = vpop.f32.mrb[0].mxu0
  %v363 = vadd.f32 0.0, %v362
  %v364 = vpop.f32.mrb[0].mxu0
  %365 = vmatprep.mubr.f32.mxu0 0.0
  %366 = vmatmul.mubr.f32.gmra.mrb[0].mxu0 %v45
  %v367 = vpop.f32.mrb[0].mxu0
  %v368 = vadd.f32 0.0, %v367
  %v369 = vpop.f32.mrb[0].mxu0
  %370 = vmatprep.mubr.f32.mxu0 0.0
  %371 = vmatmul.mubr.f32.gmra.mrb[0].mxu0 %v46
  %v372 = vpop.f32.mrb[0].mxu0
  %v373 = vadd.f32 0.0, %v372
  %v374 = vpop.f32.mrb[0].mxu0
  %375 = vdwg.mxu0
  %v376 = vmax.f32 %v298, 0.0
  %v377 = vmax.f32 %v303, 0.0
  %v378 = vmax.f32 %v308, 0.0
  %v379 = vmax.f32 %v313, 0.0
  %v380 = vmax.f32 %v318, 0.0
  %v381 = vmax.f32 %v323, 0.0
  %v382 = vmax.f32 %v328, 0.0
  %v383 = vmax.f32 %v333, 0.0
  %v384 = vmax.f32 %v338, 0.0
  %v385 = vmax.f32 %v343, 0.0
  %v386 = vmax.f32 %v348, 0.0
  %v387 = vmax.f32 %v353, 0.0
  %v388 = vmax.f32 %v358, 0.0
  %v389 = vmax.f32 %v363, 0.0
  %v390 = vmax.f32 %v368, 0.0
  %v391 = vmax.f32 %v373, 0.0
  %v392 = vld [vmem:[%s4] sm:$0xff]
  %v393 = vld [vmem:[%s4 + $0x8] sm:$0xff]
  %v394 = vld [vmem:[%s4 + $0x10] sm:$0xff]
  %v395 = vld [vmem:[%s4 + $0x18] sm:$0xff]
  %v396 = vld [vmem:[%s4 + $0x20] sm:$0xff]
  %v397 = vld [vmem:[%s4 + $0x28] sm:$0xff]
  %v398 = vld [vmem:[%s4 + $0x30] sm:$0xff]
  %v399 = vld [vmem:[%s4 + $0x38] sm:$0xff]
  %v400 = vld [vmem:[%s4 + $0x40] sm:$0xff]
  %v401 = vld [vmem:[%s4 + $0x48] sm:$0xff]
  %v402 = vld [vmem:[%s4 + $0x50] sm:$0xff]
  %v403 = vld [vmem:[%s4 + $0x58] sm:$0xff]
  %v404 = vld [vmem:[%s4 + $0x60] sm:$0xff]
  %v405 = vld [vmem:[%s4 + $0x68] sm:$0xff]
  %v406 = vld [vmem:[%s4 + $0x70] sm:$0xff]
  %v407 = vld [vmem:[%s4 + $0x78] sm:$0xff]
  %v408 = vld [vmem:[%s5] sm:$0x1]
  %v410 = vlaneseq
  %v411 = vshrl.u32 %v410, 7
  %v412 = vsub.s32 0, %v411
  %v413 = vrot.slane %v408, %v412
  %415 = vmatprep.subr.mxu0 0.0
  %416 = vmatpush1.msra.mxu0 %v392
  %417 = vmatprep.subr.mxu0 0.0
  %418 = vmatpush1.msra.mxu0 %v393
  %419 = vmatprep.subr.mxu0 0.0
  %420 = vmatpush1.msra.mxu0 %v394
  %421 = vmatprep.subr.mxu0 0.0
  %422 = vmatpush1.msra.mxu0 %v395
  %423 = vmatprep.subr.mxu0 0.0
  %424 = vmatpush1.msra.mxu0 %v396
  %425 = vmatprep.subr.mxu0 0.0
  %426 = vmatpush1.msra.mxu0 %v397
  %427 = vmatprep.subr.mxu0 0.0
  %428 = vmatpush1.msra.mxu0 %v398
  %429 = vmatprep.subr.mxu0 0.0
  %430 = vmatpush1.msra.mxu0 %v399
  %431 = vmatprep.subr.mxu0 0.0
  %432 = vmatpush1.msra.mxu0 %v400
  %433 = vmatprep.subr.mxu0 0.0
  %434 = vmatpush1.msra.mxu0 %v401
  %435 = vmatprep.subr.mxu0 0.0
  %436 = vmatpush1.msra.mxu0 %v402
  %437 = vmatprep.subr.mxu0 0.0
  %438 = vmatpush1.msra.mxu0 %v403
  %439 = vmatprep.subr.mxu0 0.0
  %440 = vmatpush1.msra.mxu0 %v404
  %441 = vmatprep.subr.mxu0 0.0
  %442 = vmatpush1.msra.mxu0 %v405
  %443 = vmatprep.subr.mxu0 0.0
  %444 = vmatpush1.msra.mxu0 %v406
  %445 = vmatprep.subr.mxu0 0.0
  %446 = vmatpush1.msra.mxu0 %v407
  %447 = vmatprep.subr.mxu0 0.0
  %448 = vmatpush1.msra.mxu0 0.0
  %449 = vmatprep.subr.mxu0 0.0
  %450 = vmatpush1.msra.mxu0 0.0
  %451 = vmatprep.subr.mxu0 0.0
  %452 = vmatpush1.msra.mxu0 0.0
  %453 = vmatprep.subr.mxu0 0.0
  %454 = vmatpush1.msra.mxu0 0.0
  %455 = vmatprep.subr.mxu0 0.0
  %456 = vmatpush1.msra.mxu0 0.0
  %457 = vmatprep.subr.mxu0 0.0
  %458 = vmatpush1.msra.mxu0 0.0
  %459 = vmatprep.subr.mxu0 0.0
  %460 = vmatpush1.msra.mxu0 0.0
  %461 = vmatprep.subr.mxu0 0.0
  %462 = vmatpush1.msra.mxu0 0.0
  %463 = vmatprep.subr.mxu0 0.0
  %464 = vmatpush1.msra.mxu0 0.0
  %465 = vmatprep.subr.mxu0 0.0
  %466 = vmatpush1.msra.mxu0 0.0
  %467 = vmatprep.subr.mxu0 0.0
  %468 = vmatpush1.msra.mxu0 0.0
  %469 = vmatprep.subr.mxu0 0.0
  %470 = vmatpush1.msra.mxu0 0.0
  %471 = vmatprep.subr.mxu0 0.0
  %472 = vmatpush1.msra.mxu0 0.0
  %473 = vmatprep.subr.mxu0 0.0
  %474 = vmatpush1.msra.mxu0 0.0
  %475 = vmatprep.subr.mxu0 0.0
  %476 = vmatpush1.msra.mxu0 0.0
  %477 = vmatprep.subr.mxu0 0.0
  %478 = vmatpush1.msra.mxu0 0.0
  %479 = vmatprep.mubr.f32.mxu0 0.0
  %480 = vmatmul.mubr.f32.gmra.mrb[0].mxu0 %v376
  %v481 = vpop.f32.mrb[0].mxu0
  %v482 = vadd.f32 %v413, %v481
  %v483 = vpop.f32.mrb[0].mxu0
  %484 = vmatprep.mubr.f32.mxu0 0.0
  %485 = vmatmul.mubr.f32.gmra.mrb[0].mxu0 %v377
  %v486 = vpop.f32.mrb[0].mxu0
  %v487 = vadd.f32 %v413, %v486
  %v488 = vpop.f32.mrb[0].mxu0
  %489 = vmatprep.mubr.f32.mxu0 0.0
  %490 = vmatmul.mubr.f32.gmra.mrb[0].mxu0 %v378
  %v491 = vpop.f32.mrb[0].mxu0
  %v492 = vadd.f32 %v413, %v491
  %v493 = vpop.f32.mrb[0].mxu0
  %494 = vmatprep.mubr.f32.mxu0 0.0
  %495 = vmatmul.mubr.f32.gmra.mrb[0].mxu0 %v379
  %v496 = vpop.f32.mrb[0].mxu0
  %v497 = vadd.f32 %v413, %v496
  %v498 = vpop.f32.mrb[0].mxu0
  %499 = vmatprep.mubr.f32.mxu0 0.0
  %500 = vmatmul.mubr.f32.gmra.mrb[0].mxu0 %v380
  %v501 = vpop.f32.mrb[0].mxu0
  %v502 = vadd.f32 %v413, %v501
  %v503 = vpop.f32.mrb[0].mxu0
  %504 = vmatprep.mubr.f32.mxu0 0.0
  %505 = vmatmul.mubr.f32.gmra.mrb[0].mxu0 %v381
  %v506 = vpop.f32.mrb[0].mxu0
  %v507 = vadd.f32 %v413, %v506
  %v508 = vpop.f32.mrb[0].mxu0
  %509 = vmatprep.mubr.f32.mxu0 0.0
  %510 = vmatmul.mubr.f32.gmra.mrb[0].mxu0 %v382
  %v511 = vpop.f32.mrb[0].mxu0
  %v512 = vadd.f32 %v413, %v511
  %v513 = vpop.f32.mrb[0].mxu0
  %514 = vmatprep.mubr.f32.mxu0 0.0
  %515 = vmatmul.mubr.f32.gmra.mrb[0].mxu0 %v383
  %v516 = vpop.f32.mrb[0].mxu0
  %v517 = vadd.f32 %v413, %v516
  %v518 = vpop.f32.mrb[0].mxu0
  %519 = vmatprep.mubr.f32.mxu0 0.0
  %520 = vmatmul.mubr.f32.gmra.mrb[0].mxu0 %v384
  %v521 = vpop.f32.mrb[0].mxu0
  %v522 = vadd.f32 %v413, %v521
  %v523 = vpop.f32.mrb[0].mxu0
  %524 = vmatprep.mubr.f32.mxu0 0.0
  %525 = vmatmul.mubr.f32.gmra.mrb[0].mxu0 %v385
  %v526 = vpop.f32.mrb[0].mxu0
  %v527 = vadd.f32 %v413, %v526
  %v528 = vpop.f32.mrb[0].mxu0
  %529 = vmatprep.mubr.f32.mxu0 0.0
  %530 = vmatmul.mubr.f32.gmra.mrb[0].mxu0 %v386
  %v531 = vpop.f32.mrb[0].mxu0
  %v532 = vadd.f32 %v413, %v531
  %v533 = vpop.f32.mrb[0].mxu0
  %534 = vmatprep.mubr.f32.mxu0 0.0
  %535 = vmatmul.mubr.f32.gmra.mrb[0].mxu0 %v387
  %v536 = vpop.f32.mrb[0].mxu0
  %v537 = vadd.f32 %v413, %v536
  %v538 = vpop.f32.mrb[0].mxu0
  %539 = vmatprep.mubr.f32.mxu0 0.0
  %540 = vmatmul.mubr.f32.gmra.mrb[0].mxu0 %v388
  %v541 = vpop.f32.mrb[0].mxu0
  %v542 = vadd.f32 %v413, %v541
  %v543 = vpop.f32.mrb[0].mxu0
  %544 = vmatprep.mubr.f32.mxu0 0.0
  %545 = vmatmul.mubr.f32.gmra.mrb[0].mxu0 %v389
  %v546 = vpop.f32.mrb[0].mxu0
  %v547 = vadd.f32 %v413, %v546
  %v548 = vpop.f32.mrb[0].mxu0
  %549 = vmatprep.mubr.f32.mxu0 0.0
  %550 = vmatmul.mubr.f32.gmra.mrb[0].mxu0 %v390
  %v551 = vpop.f32.mrb[0].mxu0
  %v552 = vadd.f32 %v413, %v551
  %v553 = vpop.f32.mrb[0].mxu0
  %554 = vmatprep.mubr.f32.mxu0 0.0
  %555 = vmatmul.mubr.f32.gmra.mrb[0].mxu0 %v391
  %v556 = vpop.f32.mrb[0].mxu0
  %v557 = vadd.f32 %v413, %v556
  %v558 = vpop.f32.mrb[0].mxu0
  %559 = vdwg.mxu0
  %560 = vmatprep.subr.mxu0 0.0
  %561 = vmatpush1.msra.mxu0 %v482
  %562 = vmatprep.subr.mxu0 0.0
  %563 = vmatpush1.msra.mxu0 %v487
  %564 = vmatprep.subr.mxu0 0.0
  %565 = vmatpush1.msra.mxu0 %v492
  %566 = vmatprep.subr.mxu0 0.0
  %567 = vmatpush1.msra.mxu0 %v497
  %568 = vmatprep.subr.mxu0 0.0
  %569 = vmatpush1.msra.mxu0 %v502
  %570 = vmatprep.subr.mxu0 0.0
  %571 = vmatpush1.msra.mxu0 %v507
  %572 = vmatprep.subr.mxu0 0.0
  %573 = vmatpush1.msra.mxu0 %v512
  %574 = vmatprep.subr.mxu0 0.0
  %575 = vmatpush1.msra.mxu0 %v517
  %576 = vmatprep.subr.mxu0 0.0
  %577 = vmatpush1.msra.mxu0 %v522
  %578 = vmatprep.subr.mxu0 0.0
  %579 = vmatpush1.msra.mxu0 %v527
  %580 = vmatprep.subr.mxu0 0.0
  %581 = vmatpush1.msra.mxu0 %v532
  %582 = vmatprep.subr.mxu0 0.0
  %583 = vmatpush1.msra.mxu0 %v537
  %584 = vmatprep.subr.mxu0 0.0
  %585 = vmatpush1.msra.mxu0 %v542
  %586 = vmatprep.subr.mxu0 0.0
  %587 = vmatpush1.msra.mxu0 %v547
  %588 = vmatprep.subr.mxu0 0.0
  %589 = vmatpush1.msra.mxu0 %v552
  %590 = vmatprep.subr.mxu0 0.0
  %591 = vmatpush1.msra.mxu0 %v557
  %592 = vmatprep.subr.mxu0 0.0
  %593 = vmatpush1.msra.mxu0 0.0
  %594 = vmatprep.subr.mxu0 0.0
  %595 = vmatpush1.msra.mxu0 0.0
  %596 = vmatprep.subr.mxu0 0.0
  %597 = vmatpush1.msra.mxu0 0.0
  %598 = vmatprep.subr.mxu0 0.0
  %599 = vmatpush1.msra.mxu0 0.0
  %600 = vmatprep.subr.mxu0 0.0
  %601 = vmatpush1.msra.mxu0 0.0
  %602 = vmatprep.subr.mxu0 0.0
  %603 = vmatpush1.msra.mxu0 0.0
  %604 = vmatprep.subr.mxu0 0.0
  %605 = vmatpush1.msra.mxu0 0.0
  %606 = vmatprep.subr.mxu0 0.0
  %607 = vmatpush1.msra.mxu0 0.0
  %608 = vmatprep.subr.mxu0 0.0
  %609 = vmatpush1.msra.mxu0 0.0
  %610 = vmatprep.subr.mxu0 0.0
  %611 = vmatpush1.msra.mxu0 0.0
  %612 = vmatprep.subr.mxu0 0.0
  %613 = vmatpush1.msra.mxu0 0.0
  %614 = vmatprep.subr.mxu0 0.0
  %615 = vmatpush1.msra.mxu0 0.0
  %616 = vmatprep.subr.mxu0 0.0
  %617 = vmatpush1.msra.mxu0 0.0
  %618 = vmatprep.subr.mxu0 0.0
  %619 = vmatpush1.msra.mxu0 0.0
  %620 = vmatprep.subr.mxu0 0.0
  %621 = vmatpush1.msra.mxu0 0.0
  %622 = vmatprep.subr.mxu0 0.0
  %623 = vmatpush1.msra.mxu0 0.0
  %624 = vmatprep.mubr.f32.mxu0 0.0
  %625 = vmatmul.mubr.f32.gmra.mrb[0].mxu0 %v31
  %v626 = vpop.f32.mrb[0].mxu0
  %v627 = vadd.f32 0.0, %v626
  %v628 = vpop.f32.mrb[0].mxu0
  %629 = vmatprep.mubr.f32.mxu0 0.0
  %630 = vmatmul.mubr.f32.gmra.mrb[0].mxu0 %v32
  %v631 = vpop.f32.mrb[0].mxu0
  %v632 = vadd.f32 0.0, %v631
  %v633 = vpop.f32.mrb[0].mxu0
  %634 = vmatprep.mubr.f32.mxu0 0.0
  %635 = vmatmul.mubr.f32.gmra.mrb[0].mxu0 %v33
  %v636 = vpop.f32.mrb[0].mxu0
  %v637 = vadd.f32 0.0, %v636
  %v638 = vpop.f32.mrb[0].mxu0
  %639 = vmatprep.mubr.f32.mxu0 0.0
  %640 = vmatmul.mubr.f32.gmra.mrb[0].mxu0 %v34
  %v641 = vpop.f32.mrb[0].mxu0
  %v642 = vadd.f32 0.0, %v641
  %v643 = vpop.f32.mrb[0].mxu0
  %644 = vmatprep.mubr.f32.mxu0 0.0
  %645 = vmatmul.mubr.f32.gmra.mrb[0].mxu0 %v35
  %v646 = vpop.f32.mrb[0].mxu0
  %v647 = vadd.f32 0.0, %v646
  %v648 = vpop.f32.mrb[0].mxu0
  %649 = vmatprep.mubr.f32.mxu0 0.0
  %650 = vmatmul.mubr.f32.gmra.mrb[0].mxu0 %v36
  %v651 = vpop.f32.mrb[0].mxu0
  %v652 = vadd.f32 0.0, %v651
  %v653 = vpop.f32.mrb[0].mxu0
  %654 = vmatprep.mubr.f32.mxu0 0.0
  %655 = vmatmul.mubr.f32.gmra.mrb[0].mxu0 %v37
  %v656 = vpop.f32.mrb[0].mxu0
  %v657 = vadd.f32 0.0, %v656
  %v658 = vpop.f32.mrb[0].mxu0
  %659 = vmatprep.mubr.f32.mxu0 0.0
  %660 = vmatmul.mubr.f32.gmra.mrb[0].mxu0 %v38
  %v661 = vpop.f32.mrb[0].mxu0
  %v662 = vadd.f32 0.0, %v661
  %v663 = vpop.f32.mrb[0].mxu0
  %664 = vmatprep.mubr.f32.mxu0 0.0
  %665 = vmatmul.mubr.f32.gmra.mrb[0].mxu0 %v39
  %v666 = vpop.f32.mrb[0].mxu0
  %v667 = vadd.f32 0.0, %v666
  %v668 = vpop.f32.mrb[0].mxu0
  %669 = vmatprep.mubr.f32.mxu0 0.0
  %670 = vmatmul.mubr.f32.gmra.mrb[0].mxu0 %v40
  %v671 = vpop.f32.mrb[0].mxu0
  %v672 = vadd.f32 0.0, %v671
  %v673 = vpop.f32.mrb[0].mxu0
  %674 = vmatprep.mubr.f32.mxu0 0.0
  %675 = vmatmul.mubr.f32.gmra.mrb[0].mxu0 %v41
  %v676 = vpop.f32.mrb[0].mxu0
  %v677 = vadd.f32 0.0, %v676
  %v678 = vpop.f32.mrb[0].mxu0
  %679 = vmatprep.mubr.f32.mxu0 0.0
  %680 = vmatmul.mubr.f32.gmra.mrb[0].mxu0 %v42
  %v681 = vpop.f32.mrb[0].mxu0
  %v682 = vadd.f32 0.0, %v681
  %v683 = vpop.f32.mrb[0].mxu0
  %684 = vmatprep.mubr.f32.mxu0 0.0
  %685 = vmatmul.mubr.f32.gmra.mrb[0].mxu0 %v43
  %v686 = vpop.f32.mrb[0].mxu0
  %v687 = vadd.f32 0.0, %v686
  %v688 = vpop.f32.mrb[0].mxu0
  %689 = vmatprep.mubr.f32.mxu0 0.0
  %690 = vmatmul.mubr.f32.gmra.mrb[0].mxu0 %v44
  %v691 = vpop.f32.mrb[0].mxu0
  %v692 = vadd.f32 0.0, %v691
  %v693 = vpop.f32.mrb[0].mxu0
  %694 = vmatprep.mubr.f32.mxu0 0.0
  %695 = vmatmul.mubr.f32.gmra.mrb[0].mxu0 %v45
  %v696 = vpop.f32.mrb[0].mxu0
  %v697 = vadd.f32 0.0, %v696
  %v698 = vpop.f32.mrb[0].mxu0
  %699 = vmatprep.mubr.f32.mxu0 0.0
  %700 = vmatmul.mubr.f32.gmra.mrb[0].mxu0 %v46
  %v701 = vpop.f32.mrb[0].mxu0
  %v702 = vadd.f32 0.0, %v701
  %v703 = vpop.f32.mrb[0].mxu0
  %704 = vdwg.mxu0
  %v705 = vmax.f32 %v627, 0.0
  %v706 = vmax.f32 %v632, 0.0
  %v707 = vmax.f32 %v637, 0.0
  %v708 = vmax.f32 %v642, 0.0
  %v709 = vmax.f32 %v647, 0.0
  %v710 = vmax.f32 %v652, 0.0
  %v711 = vmax.f32 %v657, 0.0
  %v712 = vmax.f32 %v662, 0.0
  %v713 = vmax.f32 %v667, 0.0
  %v714 = vmax.f32 %v672, 0.0
  %v715 = vmax.f32 %v677, 0.0
  %v716 = vmax.f32 %v682, 0.0
  %v717 = vmax.f32 %v687, 0.0
  %v718 = vmax.f32 %v692, 0.0
  %v719 = vmax.f32 %v697, 0.0
  %v720 = vmax.f32 %v702, 0.0
  %v721 = vld [vmem:[%s6] sm:$0xff]
  %v722 = vld [vmem:[%s6 + $0x8] sm:$0xff]
  %v723 = vld [vmem:[%s6 + $0x10] sm:$0xff]
  %v724 = vld [vmem:[%s6 + $0x18] sm:$0xff]
  %v725 = vld [vmem:[%s6 + $0x20] sm:$0xff]
  %v726 = vld [vmem:[%s6 + $0x28] sm:$0xff]
  %v727 = vld [vmem:[%s6 + $0x30] sm:$0xff]
  %v728 = vld [vmem:[%s6 + $0x38] sm:$0xff]
  %v729 = vld [vmem:[%s6 + $0x40] sm:$0xff]
  %v730 = vld [vmem:[%s6 + $0x48] sm:$0xff]
  %v731 = vld [vmem:[%s6 + $0x50] sm:$0xff]
  %v732 = vld [vmem:[%s6 + $0x58] sm:$0xff]
  %v733 = vld [vmem:[%s6 + $0x60] sm:$0xff]
  %v734 = vld [vmem:[%s6 + $0x68] sm:$0xff]
  %v735 = vld [vmem:[%s6 + $0x70] sm:$0xff]
  %v736 = vld [vmem:[%s6 + $0x78] sm:$0xff]
  %v737 = vld [vmem:[%s7] sm:$0x1]
  %v739 = vlaneseq
  %v740 = vshrl.u32 %v739, 7
  %v741 = vsub.s32 0, %v740
  %v742 = vrot.slane %v737, %v741
  %744 = vmatprep.subr.mxu0 0.0
  %745 = vmatpush1.msra.mxu0 %v721
  %746 = vmatprep.subr.mxu0 0.0
  %747 = vmatpush1.msra.mxu0 %v722
  %748 = vmatprep.subr.mxu0 0.0
  %749 = vmatpush1.msra.mxu0 %v723
  %750 = vmatprep.subr.mxu0 0.0
  %751 = vmatpush1.msra.mxu0 %v724
  %752 = vmatprep.subr.mxu0 0.0
  %753 = vmatpush1.msra.mxu0 %v725
  %754 = vmatprep.subr.mxu0 0.0
  %755 = vmatpush1.msra.mxu0 %v726
  %756 = vmatprep.subr.mxu0 0.0
  %757 = vmatpush1.msra.mxu0 %v727
  %758 = vmatprep.subr.mxu0 0.0
  %759 = vmatpush1.msra.mxu0 %v728
  %760 = vmatprep.subr.mxu0 0.0
  %761 = vmatpush1.msra.mxu0 %v729
  %762 = vmatprep.subr.mxu0 0.0
  %763 = vmatpush1.msra.mxu0 %v730
  %764 = vmatprep.subr.mxu0 0.0
  %765 = vmatpush1.msra.mxu0 %v731
  %766 = vmatprep.subr.mxu0 0.0
  %767 = vmatpush1.msra.mxu0 %v732
  %768 = vmatprep.subr.mxu0 0.0
  %769 = vmatpush1.msra.mxu0 %v733
  %770 = vmatprep.subr.mxu0 0.0
  %771 = vmatpush1.msra.mxu0 %v734
  %772 = vmatprep.subr.mxu0 0.0
  %773 = vmatpush1.msra.mxu0 %v735
  %774 = vmatprep.subr.mxu0 0.0
  %775 = vmatpush1.msra.mxu0 %v736
  %776 = vmatprep.subr.mxu0 0.0
  %777 = vmatpush1.msra.mxu0 0.0
  %778 = vmatprep.subr.mxu0 0.0
  %779 = vmatpush1.msra.mxu0 0.0
  %780 = vmatprep.subr.mxu0 0.0
  %781 = vmatpush1.msra.mxu0 0.0
  %782 = vmatprep.subr.mxu0 0.0
  %783 = vmatpush1.msra.mxu0 0.0
  %784 = vmatprep.subr.mxu0 0.0
  %785 = vmatpush1.msra.mxu0 0.0
  %786 = vmatprep.subr.mxu0 0.0
  %787 = vmatpush1.msra.mxu0 0.0
  %788 = vmatprep.subr.mxu0 0.0
  %789 = vmatpush1.msra.mxu0 0.0
  %790 = vmatprep.subr.mxu0 0.0
  %791 = vmatpush1.msra.mxu0 0.0
  %792 = vmatprep.subr.mxu0 0.0
  %793 = vmatpush1.msra.mxu0 0.0
  %794 = vmatprep.subr.mxu0 0.0
  %795 = vmatpush1.msra.mxu0 0.0
  %796 = vmatprep.subr.mxu0 0.0
  %797 = vmatpush1.msra.mxu0 0.0
  %798 = vmatprep.subr.mxu0 0.0
  %799 = vmatpush1.msra.mxu0 0.0
  %800 = vmatprep.subr.mxu0 0.0
  %801 = vmatpush1.msra.mxu0 0.0
  %802 = vmatprep.subr.mxu0 0.0
  %803 = vmatpush1.msra.mxu0 0.0
  %804 = vmatprep.subr.mxu0 0.0
  %805 = vmatpush1.msra.mxu0 0.0
  %806 = vmatprep.subr.mxu0 0.0
  %807 = vmatpush1.msra.mxu0 0.0
  %808 = vmatprep.mubr.f32.mxu0 0.0
  %809 = vmatmul.mubr.f32.gmra.mrb[0].mxu0 %v705
  %v810 = vpop.f32.mrb[0].mxu0
  %v811 = vadd.f32 %v742, %v810
  %v812 = vpop.f32.mrb[0].mxu0
  %813 = vmatprep.mubr.f32.mxu0 0.0
  %814 = vmatmul.mubr.f32.gmra.mrb[0].mxu0 %v706
  %v815 = vpop.f32.mrb[0].mxu0
  %v816 = vadd.f32 %v742, %v815
  %v817 = vpop.f32.mrb[0].mxu0
  %818 = vmatprep.mubr.f32.mxu0 0.0
  %819 = vmatmul.mubr.f32.gmra.mrb[0].mxu0 %v707
  %v820 = vpop.f32.mrb[0].mxu0
  %v821 = vadd.f32 %v742, %v820
  %v822 = vpop.f32.mrb[0].mxu0
  %823 = vmatprep.mubr.f32.mxu0 0.0
  %824 = vmatmul.mubr.f32.gmra.mrb[0].mxu0 %v708
  %v825 = vpop.f32.mrb[0].mxu0
  %v826 = vadd.f32 %v742, %v825
  %v827 = vpop.f32.mrb[0].mxu0
  %828 = vmatprep.mubr.f32.mxu0 0.0
  %829 = vmatmul.mubr.f32.gmra.mrb[0].mxu0 %v709
  %v830 = vpop.f32.mrb[0].mxu0
  %v831 = vadd.f32 %v742, %v830
  %v832 = vpop.f32.mrb[0].mxu0
  %833 = vmatprep.mubr.f32.mxu0 0.0
  %834 = vmatmul.mubr.f32.gmra.mrb[0].mxu0 %v710
  %v835 = vpop.f32.mrb[0].mxu0
  %v836 = vadd.f32 %v742, %v835
  %v837 = vpop.f32.mrb[0].mxu0
  %838 = vmatprep.mubr.f32.mxu0 0.0
  %839 = vmatmul.mubr.f32.gmra.mrb[0].mxu0 %v711
  %v840 = vpop.f32.mrb[0].mxu0
  %v841 = vadd.f32 %v742, %v840
  %v842 = vpop.f32.mrb[0].mxu0
  %843 = vmatprep.mubr.f32.mxu0 0.0
  %844 = vmatmul.mubr.f32.gmra.mrb[0].mxu0 %v712
  %v845 = vpop.f32.mrb[0].mxu0
  %v846 = vadd.f32 %v742, %v845
  %v847 = vpop.f32.mrb[0].mxu0
  %848 = vmatprep.mubr.f32.mxu0 0.0
  %849 = vmatmul.mubr.f32.gmra.mrb[0].mxu0 %v713
  %v850 = vpop.f32.mrb[0].mxu0
  %v851 = vadd.f32 %v742, %v850
  %v852 = vpop.f32.mrb[0].mxu0
  %853 = vmatprep.mubr.f32.mxu0 0.0
  %854 = vmatmul.mubr.f32.gmra.mrb[0].mxu0 %v714
  %v855 = vpop.f32.mrb[0].mxu0
  %v856 = vadd.f32 %v742, %v855
  %v857 = vpop.f32.mrb[0].mxu0
  %858 = vmatprep.mubr.f32.mxu0 0.0
  %859 = vmatmul.mubr.f32.gmra.mrb[0].mxu0 %v715
  %v860 = vpop.f32.mrb[0].mxu0
  %v861 = vadd.f32 %v742, %v860
  %v862 = vpop.f32.mrb[0].mxu0
  %863 = vmatprep.mubr.f32.mxu0 0.0
  %864 = vmatmul.mubr.f32.gmra.mrb[0].mxu0 %v716
  %v865 = vpop.f32.mrb[0].mxu0
  %v866 = vadd.f32 %v742, %v865
  %v867 = vpop.f32.mrb[0].mxu0
  %868 = vmatprep.mubr.f32.mxu0 0.0
  %869 = vmatmul.mubr.f32.gmra.mrb[0].mxu0 %v717
  %v870 = vpop.f32.mrb[0].mxu0
  %v871 = vadd.f32 %v742, %v870
  %v872 = vpop.f32.mrb[0].mxu0
  %873 = vmatprep.mubr.f32.mxu0 0.0
  %874 = vmatmul.mubr.f32.gmra.mrb[0].mxu0 %v718
  %v875 = vpop.f32.mrb[0].mxu0
  %v876 = vadd.f32 %v742, %v875
  %v877 = vpop.f32.mrb[0].mxu0
  %878 = vmatprep.mubr.f32.mxu0 0.0
  %879 = vmatmul.mubr.f32.gmra.mrb[0].mxu0 %v719
  %v880 = vpop.f32.mrb[0].mxu0
  %v881 = vadd.f32 %v742, %v880
  %v882 = vpop.f32.mrb[0].mxu0
  %883 = vmatprep.mubr.f32.mxu0 0.0
  %884 = vmatmul.mubr.f32.gmra.mrb[0].mxu0 %v720
  %v885 = vpop.f32.mrb[0].mxu0
  %v886 = vadd.f32 %v742, %v885
  %v887 = vpop.f32.mrb[0].mxu0
  %888 = vdwg.mxu0
  %v889 = vlaneseq
  %v890 = vand.u32 %v889, 127
  %vm891 = vcmp.lt.s32.totalorder %v890, 8
  %v892 = vsel %vm891, %v811, -1e+30
  %v893 = vsel %vm891, %v816, -1e+30
  %v894 = vsel %vm891, %v821, -1e+30
  %v895 = vsel %vm891, %v826, -1e+30
  %v896 = vsel %vm891, %v831, -1e+30
  %v897 = vsel %vm891, %v836, -1e+30
  %v898 = vsel %vm891, %v841, -1e+30
  %v899 = vsel %vm891, %v846, -1e+30
  %v900 = vsel %vm891, %v851, -1e+30
  %v901 = vsel %vm891, %v856, -1e+30
  %v902 = vsel %vm891, %v861, -1e+30
  %v903 = vsel %vm891, %v866, -1e+30
  %v904 = vsel %vm891, %v871, -1e+30
  %v905 = vsel %vm891, %v876, -1e+30
  %v906 = vsel %vm891, %v881, -1e+30
  %v907 = vsel %vm891, %v886, -1e+30
  %908 = vmax.xlane.f32.xlu0 %v892
  %v909 = vpop.xlane.xlu0 %908
  %910 = vmax.xlane.f32.xlu0 %v893
  %v911 = vpop.xlane.xlu0 %910
  %912 = vmax.xlane.f32.xlu0 %v894
  %v913 = vpop.xlane.xlu0 %912
  %914 = vmax.xlane.f32.xlu0 %v895
  %v915 = vpop.xlane.xlu0 %914
  %916 = vmax.xlane.f32.xlu0 %v896
  %v917 = vpop.xlane.xlu0 %916
  %918 = vmax.xlane.f32.xlu0 %v897
  %v919 = vpop.xlane.xlu0 %918
  %920 = vmax.xlane.f32.xlu0 %v898
  %v921 = vpop.xlane.xlu0 %920
  %922 = vmax.xlane.f32.xlu0 %v899
  %v923 = vpop.xlane.xlu0 %922
  %924 = vmax.xlane.f32.xlu0 %v900
  %v925 = vpop.xlane.xlu0 %924
  %926 = vmax.xlane.f32.xlu0 %v901
  %v927 = vpop.xlane.xlu0 %926
  %928 = vmax.xlane.f32.xlu0 %v902
  %v929 = vpop.xlane.xlu0 %928
  %930 = vmax.xlane.f32.xlu0 %v903
  %v931 = vpop.xlane.xlu0 %930
  %932 = vmax.xlane.f32.xlu0 %v904
  %v933 = vpop.xlane.xlu0 %932
  %934 = vmax.xlane.f32.xlu0 %v905
  %v935 = vpop.xlane.xlu0 %934
  %936 = vmax.xlane.f32.xlu0 %v906
  %v937 = vpop.xlane.xlu0 %936
  %938 = vmax.xlane.f32.xlu0 %v907
  %v939 = vpop.xlane.xlu0 %938
  %v940 = vsub.f32 %v892, %v909
  %v941 = vsub.f32 %v893, %v911
  %v942 = vsub.f32 %v894, %v913
  %v943 = vsub.f32 %v895, %v915
  %v944 = vsub.f32 %v896, %v917
  %v945 = vsub.f32 %v897, %v919
  %v946 = vsub.f32 %v898, %v921
  %v947 = vsub.f32 %v899, %v923
  %v948 = vsub.f32 %v900, %v925
  %v949 = vsub.f32 %v901, %v927
  %v950 = vsub.f32 %v902, %v929
  %v951 = vsub.f32 %v903, %v931
  %v952 = vsub.f32 %v904, %v933
  %v953 = vsub.f32 %v905, %v935
  %v954 = vsub.f32 %v906, %v937
  %v955 = vsub.f32 %v907, %v939
  %v956 = vmul.f32 %v940, 1.442695
  %v957 = vpow.pop %v956
  %v958 = vmul.f32 %v941, 1.442695
  %v959 = vpow.pop %v958
  %v960 = vmul.f32 %v942, 1.442695
  %v961 = vpow.pop %v960
  %v962 = vmul.f32 %v943, 1.442695
  %v963 = vpow.pop %v962
  %v964 = vmul.f32 %v944, 1.442695
  %v965 = vpow.pop %v964
  %v966 = vmul.f32 %v945, 1.442695
  %v967 = vpow.pop %v966
  %v968 = vmul.f32 %v946, 1.442695
  %v969 = vpow.pop %v968
  %v970 = vmul.f32 %v947, 1.442695
  %v971 = vpow.pop %v970
  %v972 = vmul.f32 %v948, 1.442695
  %v973 = vpow.pop %v972
  %v974 = vmul.f32 %v949, 1.442695
  %v975 = vpow.pop %v974
  %v976 = vmul.f32 %v950, 1.442695
  %v977 = vpow.pop %v976
  %v978 = vmul.f32 %v951, 1.442695
  %v979 = vpow.pop %v978
  %v980 = vmul.f32 %v952, 1.442695
  %v981 = vpow.pop %v980
  %v982 = vmul.f32 %v953, 1.442695
  %v983 = vpow.pop %v982
  %v984 = vmul.f32 %v954, 1.442695
  %v985 = vpow.pop %v984
  %v986 = vmul.f32 %v955, 1.442695
  %v987 = vpow.pop %v986
  %988 = vadd.xlane.f32.xlu0 %v957
  %v989 = vpop.xlane.xlu0 %988
  %990 = vadd.xlane.f32.xlu0 %v959
  %v991 = vpop.xlane.xlu0 %990
  %992 = vadd.xlane.f32.xlu0 %v961
  %v993 = vpop.xlane.xlu0 %992
  %994 = vadd.xlane.f32.xlu0 %v963
  %v995 = vpop.xlane.xlu0 %994
  %996 = vadd.xlane.f32.xlu0 %v965
  %v997 = vpop.xlane.xlu0 %996
  %998 = vadd.xlane.f32.xlu0 %v967
  %v999 = vpop.xlane.xlu0 %998
  %1000 = vadd.xlane.f32.xlu0 %v969
  %v1001 = vpop.xlane.xlu0 %1000
  %1002 = vadd.xlane.f32.xlu0 %v971
  %v1003 = vpop.xlane.xlu0 %1002
  %1004 = vadd.xlane.f32.xlu0 %v973
  %v1005 = vpop.xlane.xlu0 %1004
  %1006 = vadd.xlane.f32.xlu0 %v975
  %v1007 = vpop.xlane.xlu0 %1006
  %1008 = vadd.xlane.f32.xlu0 %v977
  %v1009 = vpop.xlane.xlu0 %1008
  %1010 = vadd.xlane.f32.xlu0 %v979
  %v1011 = vpop.xlane.xlu0 %1010
  %1012 = vadd.xlane.f32.xlu0 %v981
  %v1013 = vpop.xlane.xlu0 %1012
  %1014 = vadd.xlane.f32.xlu0 %v983
  %v1015 = vpop.xlane.xlu0 %1014
  %1016 = vadd.xlane.f32.xlu0 %v985
  %v1017 = vpop.xlane.xlu0 %1016
  %1018 = vadd.xlane.f32.xlu0 %v987
  %v1019 = vpop.xlane.xlu0 %1018
  %v1020 = vlog2.pop %v989
  %v1021 = vmul.f32 %v1020, 0.6931472
  %v1022 = vlog2.pop %v991
  %v1023 = vmul.f32 %v1022, 0.6931472
  %v1024 = vlog2.pop %v993
  %v1025 = vmul.f32 %v1024, 0.6931472
  %v1026 = vlog2.pop %v995
  %v1027 = vmul.f32 %v1026, 0.6931472
  %v1028 = vlog2.pop %v997
  %v1029 = vmul.f32 %v1028, 0.6931472
  %v1030 = vlog2.pop %v999
  %v1031 = vmul.f32 %v1030, 0.6931472
  %v1032 = vlog2.pop %v1001
  %v1033 = vmul.f32 %v1032, 0.6931472
  %v1034 = vlog2.pop %v1003
  %v1035 = vmul.f32 %v1034, 0.6931472
  %v1036 = vlog2.pop %v1005
  %v1037 = vmul.f32 %v1036, 0.6931472
  %v1038 = vlog2.pop %v1007
  %v1039 = vmul.f32 %v1038, 0.6931472
  %v1040 = vlog2.pop %v1009
  %v1041 = vmul.f32 %v1040, 0.6931472
  %v1042 = vlog2.pop %v1011
  %v1043 = vmul.f32 %v1042, 0.6931472
  %v1044 = vlog2.pop %v1013
  %v1045 = vmul.f32 %v1044, 0.6931472
  %v1046 = vlog2.pop %v1015
  %v1047 = vmul.f32 %v1046, 0.6931472
  %v1048 = vlog2.pop %v1017
  %v1049 = vmul.f32 %v1048, 0.6931472
  %v1050 = vlog2.pop %v1019
  %v1051 = vmul.f32 %v1050, 0.6931472
  %v1052 = vsub.f32 %v940, %v1021
  %v1053 = vsub.f32 %v941, %v1023
  %v1054 = vsub.f32 %v942, %v1025
  %v1055 = vsub.f32 %v943, %v1027
  %v1056 = vsub.f32 %v944, %v1029
  %v1057 = vsub.f32 %v945, %v1031
  %v1058 = vsub.f32 %v946, %v1033
  %v1059 = vsub.f32 %v947, %v1035
  %v1060 = vsub.f32 %v948, %v1037
  %v1061 = vsub.f32 %v949, %v1039
  %v1062 = vsub.f32 %v950, %v1041
  %v1063 = vsub.f32 %v951, %v1043
  %v1064 = vsub.f32 %v952, %v1045
  %v1065 = vsub.f32 %v953, %v1047
  %v1066 = vsub.f32 %v954, %v1049
  %v1067 = vsub.f32 %v955, %v1051
  %1068 = vst [vmem:[%s8] sm:$0xff] %v1052
  %1069 = vst [vmem:[%s8 + $0x8] sm:$0xff] %v1053
  %1070 = vst [vmem:[%s8 + $0x10] sm:$0xff] %v1054
  %1071 = vst [vmem:[%s8 + $0x18] sm:$0xff] %v1055
  %1072 = vst [vmem:[%s8 + $0x20] sm:$0xff] %v1056
  %1073 = vst [vmem:[%s8 + $0x28] sm:$0xff] %v1057
  %1074 = vst [vmem:[%s8 + $0x30] sm:$0xff] %v1058
  %1075 = vst [vmem:[%s8 + $0x38] sm:$0xff] %v1059
  %1076 = vst [vmem:[%s8 + $0x40] sm:$0xff] %v1060
  %1077 = vst [vmem:[%s8 + $0x48] sm:$0xff] %v1061
  %1078 = vst [vmem:[%s8 + $0x50] sm:$0xff] %v1062
  %1079 = vst [vmem:[%s8 + $0x58] sm:$0xff] %v1063
  %1080 = vst [vmem:[%s8 + $0x60] sm:$0xff] %v1064
  %1081 = vst [vmem:[%s8 + $0x68] sm:$0xff] %v1065
  %1082 = vst [vmem:[%s8 + $0x70] sm:$0xff] %v1066
  %1083 = vst [vmem:[%s8 + $0x78] sm:$0xff] %v1067
  %1084 = vst [vmem:[%s9] sm:$0xff] %v705
  %1085 = vst [vmem:[%s9 + $0x8] sm:$0xff] %v706
  %1086 = vst [vmem:[%s9 + $0x10] sm:$0xff] %v707
  %1087 = vst [vmem:[%s9 + $0x18] sm:$0xff] %v708
  %1088 = vst [vmem:[%s9 + $0x20] sm:$0xff] %v709
  %1089 = vst [vmem:[%s9 + $0x28] sm:$0xff] %v710
  %1090 = vst [vmem:[%s9 + $0x30] sm:$0xff] %v711
  %1091 = vst [vmem:[%s9 + $0x38] sm:$0xff] %v712
  %1092 = vst [vmem:[%s9 + $0x40] sm:$0xff] %v713
  %1093 = vst [vmem:[%s9 + $0x48] sm:$0xff] %v714
  %1094 = vst [vmem:[%s9 + $0x50] sm:$0xff] %v715
  %1095 = vst [vmem:[%s9 + $0x58] sm:$0xff] %v716
  %1096 = vst [vmem:[%s9 + $0x60] sm:$0xff] %v717
  %1097 = vst [vmem:[%s9 + $0x68] sm:$0xff] %v718
  %1098 = vst [vmem:[%s9 + $0x70] sm:$0xff] %v719
  %1099 = vst [vmem:[%s9 + $0x78] sm:$0xff] %v720
  // Predicated region
  $region34: #{gnn_forward.1} parent=0 // pred_check
    _
  $region35: #{gnn_forward.1} parent=0 // pred_check_branch
    %1101 = sbr.rel (0) target = $region37
  $region36: #{gnn_forward.1} parent=0 // pred_region
    _
  $region37: #{gnn_forward.1} parent=0 // pred_fallthru
    _
  // Predicated region
  $region38: #{gnn_forward.1} parent=0 // pred_check
    _
  $region39: #{gnn_forward.1} parent=0 // pred_check_branch
    %1103 = sbr.rel (0) target = $region41
  $region40: #{gnn_forward.1} parent=0 // pred_region
    _
  $region41: #{gnn_forward.1} parent=0 // pred_fallthru
    _
  // Predicated region
  $region42: #{gnn_forward.1} parent=0 // pred_check
    _
  $region43: #{gnn_forward.1} parent=0 // pred_check_branch
    %1105 = sbr.rel (0) target = $region45
  $region44: #{gnn_forward.1} parent=0 // pred_region
    _
  $region45: #{gnn_forward.1} parent=0 // pred_fallthru
    _
  // Predicated region
  $region46: #{gnn_forward.1} parent=0 // pred_check
    _
  $region47: #{gnn_forward.1} parent=0 // pred_check_branch
    %1107 = sbr.rel (0) target = $region49
  $region48: #{gnn_forward.1} parent=0 // pred_region
    _
  $region49: #{gnn_forward.1} parent=0 // pred_fallthru
    _

</llo_original>
